<compile_context>
chip_gen: v6e
topology: v6e:2x2x1
jax: 0.10.0
libtpu: 0.0.40
codegen_flags: <defaults>
</compile_context>

<pallas_src>
import functools

import jax
import jax.numpy as jnp
from jax import lax
from jax.experimental import pallas as pl
from jax.experimental.pallas import tpu as pltpu


def _make_fused_gcn_kernel(num_layers: int):
    """Fused: h = adj @ (adj @ ... (adj @ x)); out = h / max(||h||_2, 1e-12)."""

    def kernel(adj_ref, x_ref, o_ref):
        adj = adj_ref[...]
        h = x_ref[...]
        # num_layers is a static Python int -> fully unrolled (2 small matmuls).
        for _ in range(num_layers):
            # Eval-mode dropout == identity; accumulate in f32 on the MXU.
            h = jnp.dot(adj, h.astype(adj.dtype),
                        preferred_element_type=jnp.float32)
        # F.normalize(h, dim=1, p=2): h / max(||h||_2, 1e-12)
        # rsqrt(max(ss, 1e-24)) == 1 / max(sqrt(ss), 1e-12) up to rounding,
        # and lowers to the EUP (free VLIW slot).
        ss = jnp.sum(h * h, axis=1, keepdims=True)
        inv_norm = lax.rsqrt(jnp.maximum(ss, 1e-24))
        o_ref[...] = (h * inv_norm).astype(o_ref.dtype)

    return kernel


@functools.partial(jax.jit, static_argnames=("num_layers", "compute_dtype"))
def gcn_fused(adj, x, *, num_layers=2, compute_dtype=jnp.float32):
    """All GCN layers + final L2 row-normalization for one graph, one pallas_call."""
    n, n2 = adj.shape
    assert n == n2
    _, d = x.shape

    adj_c = adj.astype(compute_dtype)
    x_c = x.astype(compute_dtype)

    # VMEM budget: adj + x inputs (compute dtype) + f32 intermediate + f32 output.
    itemsize = jnp.dtype(compute_dtype).itemsize
    est_bytes = itemsize * (n * n + n * d) + 4 * (2 * n * d)
    # Must fit comfortably inside v7x's 64 MiB VMEM (with compiler temporaries).
    assert 2 * est_bytes <= 48 * 1024 * 1024, (
        "graph too large for fully-resident fused kernel; needs K-tiled variant")
    vmem_limit = int(min(max(4 * est_bytes, 16 * 1024 * 1024), 60 * 1024 * 1024))

    return pl.pallas_call(
        _make_fused_gcn_kernel(num_layers),
        out_shape=jax.ShapeDtypeStruct((n, d), x.dtype),
        grid_spec=pltpu.PrefetchScalarGridSpec(
            num_scalar_prefetch=0,
            grid=(1,),
            in_specs=[
                pl.BlockSpec((n, n), lambda i: (0, 0)),  # full adjacency, resident
                pl.BlockSpec((n, d), lambda i: (0, 0)),  # full embeddings, resident
            ],
            out_specs=pl.BlockSpec((n, d), lambda i: (0, 0)),
        ),
        compiler_params=pltpu.CompilerParams(
            dimension_semantics=("arbitrary",),
            vmem_limit_bytes=vmem_limit),
    )(adj_c, x_c)


def gcn_forward(sr_embedding, tg_embedding, adj_sr, adj_tg, num_layers=2,
                compute_dtype=jnp.float32):
    """Mirrors GCN.forward: shared-structure GCN layers + final L2 row norm,
    fused into one Pallas kernel per graph (2 launches total)."""
    sr = gcn_fused(adj_sr, sr_embedding, num_layers=num_layers,
                   compute_dtype=compute_dtype)
    tg = gcn_fused(adj_tg, tg_embedding, num_layers=num_layers,
                   compute_dtype=compute_dtype)
    return sr, tg


def _xavier_uniform(key, shape):
    fan_in, fan_out = shape
    bound = (6.0 / (fan_in + fan_out)) ** 0.5
    return jax.random.uniform(key, shape, jnp.float32, -bound, bound)


def _make_adj(key, n):
    """Deterministic dense row-normalized adjacency with self-loops."""
    a = (jax.random.uniform(key, (n, n)) < 0.05).astype(jnp.float32)
    a = a + jnp.eye(n, dtype=jnp.float32)
    a = jnp.minimum(a, 1.0)
    deg = jnp.sum(a, axis=1, keepdims=True)
    return a / deg


def _reference_forward(sr, tg, adj_sr, adj_tg, num_layers=2):
    for _ in range(num_layers):
        sr = adj_sr @ sr
        tg = adj_tg @ tg
    sr = sr / jnp.maximum(jnp.linalg.norm(sr, axis=1, keepdims=True), 1e-12)
    tg = tg / jnp.maximum(jnp.linalg.norm(tg, axis=1, keepdims=True), 1e-12)
    return sr, tg


if __name__ == "__main__":
    num_sr, num_tg, embedding_dim, num_layers = 256, 128, 128, 2

    key = jax.random.PRNGKey(0)
    k_sr_emb, k_tg_emb, k_adj_sr, k_adj_tg = jax.random.split(key, 4)

    # DoubleEmbedding(init_type='xavier') -> two xavier-uniform embedding tables.
    sr_embedding = _xavier_uniform(k_sr_emb, (num_sr, embedding_dim))
    tg_embedding = _xavier_uniform(k_tg_emb, (num_tg, embedding_dim))

    adj_sr = _make_adj(k_adj_sr, num_sr)
    adj_tg = _make_adj(k_adj_tg, num_tg)

    sr_out, tg_out = gcn_forward(sr_embedding, tg_embedding, adj_sr, adj_tg,
                                 num_layers=num_layers)
    jax.block_until_ready((sr_out, tg_out))

    sr_ref, tg_ref = _reference_forward(sr_embedding, tg_embedding, adj_sr, adj_tg,
                                        num_layers=num_layers)
    assert sr_out.shape == (num_sr, embedding_dim)
    assert tg_out.shape == (num_tg, embedding_dim)
    assert jnp.allclose(sr_out, sr_ref, atol=1e-5), "sr mismatch"
    assert jnp.allclose(tg_out, tg_ref, atol=1e-5), "tg mismatch"

    print("KERNEL_OK")
</pallas_src>

<mosaic_0001>
module attributes {stable_mosaic.version = 11 : i64} {
  func.func @kernel(%arg0: i32, %arg1: memref<256x256xf32, #tpu.memory_space<vmem>>, %arg2: memref<256x128xf32, #tpu.memory_space<vmem>>, %arg3: memref<256x128xf32, #tpu.memory_space<vmem>>) attributes {dimension_semantics = [#tpu.dimension_semantics<arbitrary>], iteration_bounds = array<i64: 1>, scalar_prefetch = 0 : i64, scratch_operands = 0 : i64, tpu.core_type = #tpu.core_type<tc>, window_params = [{pipeline_mode = #tpu.pipeline_mode<synchronous>, transform_indices = @transform_0, window_bounds = array<i64: 256, 256>}, {pipeline_mode = #tpu.pipeline_mode<synchronous>, transform_indices = @transform_1, window_bounds = array<i64: 256, 128>}, {pipeline_mode = #tpu.pipeline_mode<synchronous>, transform_indices = @transform_2, window_bounds = array<i64: 256, 128>}]} {
    %c0 = arith.constant 0 : index
    %c0_0 = arith.constant 0 : index
    %0 = vector.load %arg1[%c0, %c0_0] : memref<256x256xf32, #tpu.memory_space<vmem>>, vector<256x256xf32>
    %c0_1 = arith.constant 0 : index
    %c0_2 = arith.constant 0 : index
    %1 = vector.load %arg2[%c0_1, %c0_2] : memref<256x128xf32, #tpu.memory_space<vmem>>, vector<256x128xf32>
    %cst = arith.constant dense<0.000000e+00> : vector<256x128xf32>
    %2 = tpu.matmul %0, %1, %cst {dimension_numbers = #tpu.dot_dimension_numbers<[1], [0], [0], [1], [0, 0, 1, 1], [], []>} : vector<256x256xf32>, vector<256x128xf32>, vector<256x128xf32> -> vector<256x128xf32>
    %cst_3 = arith.constant dense<0.000000e+00> : vector<256x128xf32>
    %3 = tpu.matmul %0, %2, %cst_3 {dimension_numbers = #tpu.dot_dimension_numbers<[1], [0], [0], [1], [0, 0, 1, 1], [], []>} : vector<256x256xf32>, vector<256x128xf32>, vector<256x128xf32> -> vector<256x128xf32>
    %4 = arith.mulf %3, %3 : vector<256x128xf32>
    %cst_4 = arith.constant dense<0.000000e+00> : vector<256xf32>
    %5 = vector.multi_reduction <add>, %4, %cst_4 [1] : vector<256x128xf32> to vector<256xf32>
    %6 = vector.shape_cast %5 : vector<256xf32> to vector<256x1xf32>
    %cst_5 = arith.constant 1.000000e-24 : f32
    %7 = vector.broadcast %cst_5 : f32 to vector<256x1xf32>
    %8 = arith.maximumf %6, %7 : vector<256x1xf32>
    %9 = math.rsqrt %8 : vector<256x1xf32>
    %10 = vector.broadcast %9 : vector<256x1xf32> to vector<256x128xf32>
    %11 = arith.mulf %3, %10 : vector<256x128xf32>
    %c0_6 = arith.constant 0 : index
    %c0_7 = arith.constant 0 : index
    %12 = vector.load %arg3[%c0_6, %c0_7] : memref<256x128xf32, #tpu.memory_space<vmem>>, vector<256x128xf32>
    tpu.vector_store %arg3[%c0_6, %c0_7], %11 {strides = array<i32>} : memref<256x128xf32, #tpu.memory_space<vmem>>, vector<256x128xf32>,
    return
  }
  func.func @transform_0(%arg0: i32) -> (i32, i32) {
    %c0_i32 = arith.constant 0 : i32
    %c0_i32_0 = arith.constant 0 : i32
    %c0_i32_1 = arith.constant 0 : i32
    return %c0_i32, %c0_i32_0 : i32, i32
  }
  func.func @transform_1(%arg0: i32) -> (i32, i32) {
    %c0_i32 = arith.constant 0 : i32
    %c0_i32_0 = arith.constant 0 : i32
    %c0_i32_1 = arith.constant 0 : i32
    return %c0_i32, %c0_i32_0 : i32, i32
  }
  func.func @transform_2(%arg0: i32) -> (i32, i32) {
    %c0_i32 = arith.constant 0 : i32
    %c0_i32_0 = arith.constant 0 : i32
    %c0_i32_1 = arith.constant 0 : i32
    return %c0_i32, %c0_i32_0 : i32, i32
  }
}

</mosaic_0001>

<llo_original>
// kernel: gcn_fused.1
$region0: #{gcn_fused.1}
  #allocation0 [shape = 'u32[]', space=smem, size = 0x4, offset = 0x4, fixed_abs, tag = 'smem constant byte address 0x4 - core index']
  #allocation1 [shape = 'u32[144,128]{1,0:T(1,128)}', space=vmem, size = 0x12000, scoped, tag = 'internal scratch']
  %s0 = inlined_call_operand.hbm [shape: f32[256,256], index: 0, kind: input, shape index: {}]
  %s1 = inlined_call_operand.hbm [shape: f32[256,128], index: 1, kind: input, shape index: {}]
  %s2 = inlined_call_operand.hbm [shape: f32[256,128], index: 2, kind: output, shape index: {}]
  %s3 = sld [smem:[#allocation0]]
  $region26: #{gcn_fused.1} parent=0
    _
  %s5 = ssub.s32 1, %s3
  %s6 = scalar_select 0, %s5, %s3
  $region1: #{gcn_fused.1} parent=0
    #allocation2 [shape = 'u8[262144]{0}', space=vmem, size = 0x40000, scoped, tag = 'input window, operand 0, single buffered']
    #allocation3 [shape = 's32[1]{0}', space=sflag, size = 0x4, scoped, tag = 'scoped memory for gcn_fused.1']
    #allocation4 [shape = 's32[1]{0}', space=sflag, size = 0x4, scoped, tag = 'scoped memory for gcn_fused.1']
    #allocation5 [shape = 'u8[131072]{0}', space=vmem, size = 0x20000, scoped, tag = 'input window, operand 1, single buffered']
    #allocation6 [shape = 's32[1]{0}', space=sflag, size = 0x4, scoped, tag = 'scoped memory for gcn_fused.1']
    #allocation7 [shape = 'u8[131072]{0}', space=vmem, size = 0x20000, scoped, tag = 'output window, operand 0, single buffered']
    %7 = vsyncpa [#allocation3], 0
    %8 = vsyncpa [#allocation6], 0
    %9 = vsyncpa [#allocation4], 0
    // Predicated region
    $region2: #{gcn_fused.1} parent=1 // pred_check
      _
    $region3: #{gcn_fused.1} parent=1 // pred_check_branch
      %11 = sbr.rel (0) target = $region5
    $region4: #{gcn_fused.1} parent=1 // pred_region
      %s13 = ssub.s32 8192, 8192
      %14 = vsyncadd [#allocation3], %s13
      %s15 = sshll.u32 [#allocation2], 4
      %s16 = int_to_ptr.vmem [resolvable:$true] %s15
      %21 = dma.hbm_to_vmem [thread:$0]  %s0, 8192, %s16, [#allocation3], 256, 256, 16
    $region5: #{gcn_fused.1} parent=1 // pred_fallthru
      _
    // Predicated region
    $region6: #{gcn_fused.1} parent=1 // pred_check
      _
    $region7: #{gcn_fused.1} parent=1 // pred_check_branch
      %23 = sbr.rel (0) target = $region9
    $region8: #{gcn_fused.1} parent=1 // pred_region
      %s25 = ssub.s32 4096, 4096
      %26 = vsyncadd [#allocation6], %s25
      %s27 = sshll.u32 [#allocation5], 4
      %s28 = int_to_ptr.vmem [resolvable:$true] %s27
      %33 = dma.hbm_to_vmem [thread:$0]  %s1, 4096, %s28, [#allocation6], 128, 128, 8
    $region9: #{gcn_fused.1} parent=1 // pred_fallthru
      _
    // Predicated region
    $region10: #{gcn_fused.1} parent=1 // pred_check
      _
    $region11: #{gcn_fused.1} parent=1 // pred_check_branch
      %35 = sbr.rel (0) target = $region13
    $region12: #{gcn_fused.1} parent=1 // pred_region
      %36 = dma.done [#allocation3], 8192
    $region13: #{gcn_fused.1} parent=1 // pred_fallthru
      _
    // Predicated region
    $region14: #{gcn_fused.1} parent=1 // pred_check
      _
    $region15: #{gcn_fused.1} parent=1 // pred_check_branch
      %38 = sbr.rel (0) target = $region17
    $region16: #{gcn_fused.1} parent=1 // pred_region
      %39 = dma.done [#allocation6], 4096
    $region17: #{gcn_fused.1} parent=1 // pred_fallthru
      _
    %v40 = vld [vmem:[#allocation2] sm:$0xff]
    %v41 = vld [vmem:[#allocation2 + $0x8] sm:$0xff]
    %v42 = vld [vmem:[#allocation2 + $0x10] sm:$0xff]
    %v43 = vld [vmem:[#allocation2 + $0x18] sm:$0xff]
    %v44 = vld [vmem:[#allocation2 + $0x20] sm:$0xff]
    %v45 = vld [vmem:[#allocation2 + $0x28] sm:$0xff]
    %v46 = vld [vmem:[#allocation2 + $0x30] sm:$0xff]
    %v47 = vld [vmem:[#allocation2 + $0x38] sm:$0xff]
    %v48 = vld [vmem:[#allocation2 + $0x40] sm:$0xff]
    %v49 = vld [vmem:[#allocation2 + $0x48] sm:$0xff]
    %v50 = vld [vmem:[#allocation2 + $0x50] sm:$0xff]
    %v51 = vld [vmem:[#allocation2 + $0x58] sm:$0xff]
    %v52 = vld [vmem:[#allocation2 + $0x60] sm:$0xff]
    %v53 = vld [vmem:[#allocation2 + $0x68] sm:$0xff]
    %v54 = vld [vmem:[#allocation2 + $0x70] sm:$0xff]
    %v55 = vld [vmem:[#allocation2 + $0x78] sm:$0xff]
    %v56 = vld [vmem:[#allocation2 + $0x80] sm:$0xff]
    %v57 = vld [vmem:[#allocation2 + $0x88] sm:$0xff]
    %v58 = vld [vmem:[#allocation2 + $0x90] sm:$0xff]
    %v59 = vld [vmem:[#allocation2 + $0x98] sm:$0xff]
    %v60 = vld [vmem:[#allocation2 + $0xa0] sm:$0xff]
    %v61 = vld [vmem:[#allocation2 + $0xa8] sm:$0xff]
    %v62 = vld [vmem:[#allocation2 + $0xb0] sm:$0xff]
    %v63 = vld [vmem:[#allocation2 + $0xb8] sm:$0xff]
    %v64 = vld [vmem:[#allocation2 + $0xc0] sm:$0xff]
    %v65 = vld [vmem:[#allocation2 + $0xc8] sm:$0xff]
    %v66 = vld [vmem:[#allocation2 + $0xd0] sm:$0xff]
    %v67 = vld [vmem:[#allocation2 + $0xd8] sm:$0xff]
    %v68 = vld [vmem:[#allocation2 + $0xe0] sm:$0xff]
    %v69 = vld [vmem:[#allocation2 + $0xe8] sm:$0xff]
    %v70 = vld [vmem:[#allocation2 + $0xf0] sm:$0xff]
    %v71 = vld [vmem:[#allocation2 + $0xf8] sm:$0xff]
    %v72 = vld [vmem:[#allocation2 + $0x100] sm:$0xff]
    %v73 = vld [vmem:[#allocation2 + $0x108] sm:$0xff]
    %v74 = vld [vmem:[#allocation2 + $0x110] sm:$0xff]
    %v75 = vld [vmem:[#allocation2 + $0x118] sm:$0xff]
    %v76 = vld [vmem:[#allocation2 + $0x120] sm:$0xff]
    %v77 = vld [vmem:[#allocation2 + $0x128] sm:$0xff]
    %v78 = vld [vmem:[#allocation2 + $0x130] sm:$0xff]
    %v79 = vld [vmem:[#allocation2 + $0x138] sm:$0xff]
    %v80 = vld [vmem:[#allocation2 + $0x140] sm:$0xff]
    %v81 = vld [vmem:[#allocation2 + $0x148] sm:$0xff]
    %v82 = vld [vmem:[#allocation2 + $0x150] sm:$0xff]
    %v83 = vld [vmem:[#allocation2 + $0x158] sm:$0xff]
    %v84 = vld [vmem:[#allocation2 + $0x160] sm:$0xff]
    %v85 = vld [vmem:[#allocation2 + $0x168] sm:$0xff]
    %v86 = vld [vmem:[#allocation2 + $0x170] sm:$0xff]
    %v87 = vld [vmem:[#allocation2 + $0x178] sm:$0xff]
    %v88 = vld [vmem:[#allocation2 + $0x180] sm:$0xff]
    %v89 = vld [vmem:[#allocation2 + $0x188] sm:$0xff]
    %v90 = vld [vmem:[#allocation2 + $0x190] sm:$0xff]
    %v91 = vld [vmem:[#allocation2 + $0x198] sm:$0xff]
    %v92 = vld [vmem:[#allocation2 + $0x1a0] sm:$0xff]
    %v93 = vld [vmem:[#allocation2 + $0x1a8] sm:$0xff]
    %v94 = vld [vmem:[#allocation2 + $0x1b0] sm:$0xff]
    %v95 = vld [vmem:[#allocation2 + $0x1b8] sm:$0xff]
    %v96 = vld [vmem:[#allocation2 + $0x1c0] sm:$0xff]
    %v97 = vld [vmem:[#allocation2 + $0x1c8] sm:$0xff]
    %v98 = vld [vmem:[#allocation2 + $0x1d0] sm:$0xff]
    %v99 = vld [vmem:[#allocation2 + $0x1d8] sm:$0xff]
    %v100 = vld [vmem:[#allocation2 + $0x1e0] sm:$0xff]
    %v101 = vld [vmem:[#allocation2 + $0x1e8] sm:$0xff]
    %v102 = vld [vmem:[#allocation2 + $0x1f0] sm:$0xff]
    %v103 = vld [vmem:[#allocation2 + $0x1f8] sm:$0xff]
    %v104 = vld [vmem:[#allocation5] sm:$0xff]
    %v105 = vld [vmem:[#allocation5 + $0x8] sm:$0xff]
    %v106 = vld [vmem:[#allocation5 + $0x10] sm:$0xff]
    %v107 = vld [vmem:[#allocation5 + $0x18] sm:$0xff]
    %v108 = vld [vmem:[#allocation5 + $0x20] sm:$0xff]
    %v109 = vld [vmem:[#allocation5 + $0x28] sm:$0xff]
    %v110 = vld [vmem:[#allocation5 + $0x30] sm:$0xff]
    %v111 = vld [vmem:[#allocation5 + $0x38] sm:$0xff]
    %v112 = vld [vmem:[#allocation5 + $0x40] sm:$0xff]
    %v113 = vld [vmem:[#allocation5 + $0x48] sm:$0xff]
    %v114 = vld [vmem:[#allocation5 + $0x50] sm:$0xff]
    %v115 = vld [vmem:[#allocation5 + $0x58] sm:$0xff]
    %v116 = vld [vmem:[#allocation5 + $0x60] sm:$0xff]
    %v117 = vld [vmem:[#allocation5 + $0x68] sm:$0xff]
    %v118 = vld [vmem:[#allocation5 + $0x70] sm:$0xff]
    %v119 = vld [vmem:[#allocation5 + $0x78] sm:$0xff]
    %v120 = vld [vmem:[#allocation5 + $0x80] sm:$0xff]
    %v121 = vld [vmem:[#allocation5 + $0x88] sm:$0xff]
    %v122 = vld [vmem:[#allocation5 + $0x90] sm:$0xff]
    %v123 = vld [vmem:[#allocation5 + $0x98] sm:$0xff]
    %v124 = vld [vmem:[#allocation5 + $0xa0] sm:$0xff]
    %v125 = vld [vmem:[#allocation5 + $0xa8] sm:$0xff]
    %v126 = vld [vmem:[#allocation5 + $0xb0] sm:$0xff]
    %v127 = vld [vmem:[#allocation5 + $0xb8] sm:$0xff]
    %v128 = vld [vmem:[#allocation5 + $0xc0] sm:$0xff]
    %v129 = vld [vmem:[#allocation5 + $0xc8] sm:$0xff]
    %v130 = vld [vmem:[#allocation5 + $0xd0] sm:$0xff]
    %v131 = vld [vmem:[#allocation5 + $0xd8] sm:$0xff]
    %v132 = vld [vmem:[#allocation5 + $0xe0] sm:$0xff]
    %v133 = vld [vmem:[#allocation5 + $0xe8] sm:$0xff]
    %v134 = vld [vmem:[#allocation5 + $0xf0] sm:$0xff]
    %v135 = vld [vmem:[#allocation5 + $0xf8] sm:$0xff]
    %136 = vmatprep.subr.mxu0 0.0
    %137 = vmatpush1.msra.mxu0 %v119
    %138 = vmatprep.subr.mxu0 0.0
    %139 = vmatpush1.msra.mxu0 %v118
    %140 = vmatprep.subr.mxu0 0.0
    %141 = vmatpush1.msra.mxu0 %v117
    %142 = vmatprep.subr.mxu0 0.0
    %143 = vmatpush1.msra.mxu0 %v116
    %144 = vmatprep.subr.mxu0 0.0
    %145 = vmatpush1.msra.mxu0 %v115
    %146 = vmatprep.subr.mxu0 0.0
    %147 = vmatpush1.msra.mxu0 %v114
    %148 = vmatprep.subr.mxu0 0.0
    %149 = vmatpush1.msra.mxu0 %v113
    %150 = vmatprep.subr.mxu0 0.0
    %151 = vmatpush1.msra.mxu0 %v112
    %152 = vmatprep.subr.mxu0 0.0
    %153 = vmatpush1.msra.mxu0 %v111
    %154 = vmatprep.subr.mxu0 0.0
    %155 = vmatpush1.msra.mxu0 %v110
    %156 = vmatprep.subr.mxu0 0.0
    %157 = vmatpush1.msra.mxu0 %v109
    %158 = vmatprep.subr.mxu0 0.0
    %159 = vmatpush1.msra.mxu0 %v108
    %160 = vmatprep.subr.mxu0 0.0
    %161 = vmatpush1.msra.mxu0 %v107
    %162 = vmatprep.subr.mxu0 0.0
    %163 = vmatpush1.msra.mxu0 %v106
    %164 = vmatprep.subr.mxu0 0.0
    %165 = vmatpush1.msra.mxu0 %v105
    %166 = vmatprep.subr.mxu0 0.0
    %167 = vmatpush1.msra.mxu0 %v104
    %168 = vmatprep.subr.mxu0 0.0
    %169 = vmatpush2.msra.mxu0 %v135
    %170 = vmatprep.subr.mxu0 0.0
    %171 = vmatpush2.msra.mxu0 %v134
    %172 = vmatprep.subr.mxu0 0.0
    %173 = vmatpush2.msra.mxu0 %v133
    %174 = vmatprep.subr.mxu0 0.0
    %175 = vmatpush2.msra.mxu0 %v132
    %176 = vmatprep.subr.mxu0 0.0
    %177 = vmatpush2.msra.mxu0 %v131
    %178 = vmatprep.subr.mxu0 0.0
    %179 = vmatpush2.msra.mxu0 %v130
    %180 = vmatprep.subr.mxu0 0.0
    %181 = vmatpush2.msra.mxu0 %v129
    %182 = vmatprep.subr.mxu0 0.0
    %183 = vmatpush2.msra.mxu0 %v128
    %184 = vmatprep.subr.mxu0 0.0
    %185 = vmatpush2.msra.mxu0 %v127
    %186 = vmatprep.subr.mxu0 0.0
    %187 = vmatpush2.msra.mxu0 %v126
    %188 = vmatprep.subr.mxu0 0.0
    %189 = vmatpush2.msra.mxu0 %v125
    %190 = vmatprep.subr.mxu0 0.0
    %191 = vmatpush2.msra.mxu0 %v124
    %192 = vmatprep.subr.mxu0 0.0
    %193 = vmatpush2.msra.mxu0 %v123
    %194 = vmatprep.subr.mxu0 0.0
    %195 = vmatpush2.msra.mxu0 %v122
    %196 = vmatprep.subr.mxu0 0.0
    %197 = vmatpush2.msra.mxu0 %v121
    %198 = vmatprep.subr.mxu0 0.0
    %199 = vmatpush2.msra.mxu0 %v120
    %200 = vmatprep.mubr.f32.mxu0 %v41
    %201 = vmatmul.mubr.f32.gmra.mxu0 %v40
    %v202 = vpop.f32.mrf.mxu0
    %v203 = vadd.f32 0.0, %v202
    %v204 = vpop.f32.mrf.mxu0
    %205 = vmatprep.mubr.f32.mxu0 %v43
    %206 = vmatmul.mubr.f32.gmra.mxu0 %v42
    %v207 = vpop.f32.mrf.mxu0
    %v208 = vadd.f32 0.0, %v207
    %v209 = vpop.f32.mrf.mxu0
    %210 = vmatprep.mubr.f32.mxu0 %v45
    %211 = vmatmul.mubr.f32.gmra.mxu0 %v44
    %v212 = vpop.f32.mrf.mxu0
    %v213 = vadd.f32 0.0, %v212
    %v214 = vpop.f32.mrf.mxu0
    %215 = vmatprep.mubr.f32.mxu0 %v47
    %216 = vmatmul.mubr.f32.gmra.mxu0 %v46
    %v217 = vpop.f32.mrf.mxu0
    %v218 = vadd.f32 0.0, %v217
    %v219 = vpop.f32.mrf.mxu0
    %220 = vmatprep.mubr.f32.mxu0 %v49
    %221 = vmatmul.mubr.f32.gmra.mxu0 %v48
    %v222 = vpop.f32.mrf.mxu0
    %v223 = vadd.f32 0.0, %v222
    %v224 = vpop.f32.mrf.mxu0
    %225 = vmatprep.mubr.f32.mxu0 %v51
    %226 = vmatmul.mubr.f32.gmra.mxu0 %v50
    %v227 = vpop.f32.mrf.mxu0
    %v228 = vadd.f32 0.0, %v227
    %v229 = vpop.f32.mrf.mxu0
    %230 = vmatprep.mubr.f32.mxu0 %v53
    %231 = vmatmul.mubr.f32.gmra.mxu0 %v52
    %v232 = vpop.f32.mrf.mxu0
    %v233 = vadd.f32 0.0, %v232
    %v234 = vpop.f32.mrf.mxu0
    %235 = vmatprep.mubr.f32.mxu0 %v55
    %236 = vmatmul.mubr.f32.gmra.mxu0 %v54
    %v237 = vpop.f32.mrf.mxu0
    %v238 = vadd.f32 0.0, %v237
    %v239 = vpop.f32.mrf.mxu0
    %240 = vmatprep.mubr.f32.mxu0 %v57
    %241 = vmatmul.mubr.f32.gmra.mxu0 %v56
    %v242 = vpop.f32.mrf.mxu0
    %v243 = vadd.f32 0.0, %v242
    %v244 = vpop.f32.mrf.mxu0
    %245 = vmatprep.mubr.f32.mxu0 %v59
    %246 = vmatmul.mubr.f32.gmra.mxu0 %v58
    %v247 = vpop.f32.mrf.mxu0
    %v248 = vadd.f32 0.0, %v247
    %v249 = vpop.f32.mrf.mxu0
    %250 = vmatprep.mubr.f32.mxu0 %v61
    %251 = vmatmul.mubr.f32.gmra.mxu0 %v60
    %v252 = vpop.f32.mrf.mxu0
    %v253 = vadd.f32 0.0, %v252
    %v254 = vpop.f32.mrf.mxu0
    %255 = vmatprep.mubr.f32.mxu0 %v63
    %256 = vmatmul.mubr.f32.gmra.mxu0 %v62
    %v257 = vpop.f32.mrf.mxu0
    %v258 = vadd.f32 0.0, %v257
    %v259 = vpop.f32.mrf.mxu0
    %260 = vmatprep.mubr.f32.mxu0 %v65
    %261 = vmatmul.mubr.f32.gmra.mxu0 %v64
    %v262 = vpop.f32.mrf.mxu0
    %v263 = vadd.f32 0.0, %v262
    %v264 = vpop.f32.mrf.mxu0
    %265 = vmatprep.mubr.f32.mxu0 %v67
    %266 = vmatmul.mubr.f32.gmra.mxu0 %v66
    %v267 = vpop.f32.mrf.mxu0
    %v268 = vadd.f32 0.0, %v267
    %v269 = vpop.f32.mrf.mxu0
    %270 = vmatprep.mubr.f32.mxu0 %v69
    %271 = vmatmul.mubr.f32.gmra.mxu0 %v68
    %v272 = vpop.f32.mrf.mxu0
    %v273 = vadd.f32 0.0, %v272
    %v274 = vpop.f32.mrf.mxu0
    %275 = vmatprep.mubr.f32.mxu0 %v71
    %276 = vmatmul.mubr.f32.gmra.mxu0 %v70
    %v277 = vpop.f32.mrf.mxu0
    %v278 = vadd.f32 0.0, %v277
    %v279 = vpop.f32.mrf.mxu0
    %280 = vmatprep.mubr.f32.mxu0 %v73
    %281 = vmatmul.mubr.f32.gmra.mxu0 %v72
    %v282 = vpop.f32.mrf.mxu0
    %v283 = vadd.f32 0.0, %v282
    %v284 = vpop.f32.mrf.mxu0
    %285 = vmatprep.mubr.f32.mxu0 %v75
    %286 = vmatmul.mubr.f32.gmra.mxu0 %v74
    %v287 = vpop.f32.mrf.mxu0
    %v288 = vadd.f32 0.0, %v287
    %v289 = vpop.f32.mrf.mxu0
    %290 = vmatprep.mubr.f32.mxu0 %v77
    %291 = vmatmul.mubr.f32.gmra.mxu0 %v76
    %v292 = vpop.f32.mrf.mxu0
    %v293 = vadd.f32 0.0, %v292
    %v294 = vpop.f32.mrf.mxu0
    %295 = vmatprep.mubr.f32.mxu0 %v79
    %296 = vmatmul.mubr.f32.gmra.mxu0 %v78
    %v297 = vpop.f32.mrf.mxu0
    %v298 = vadd.f32 0.0, %v297
    %v299 = vpop.f32.mrf.mxu0
    %300 = vmatprep.mubr.f32.mxu0 %v81
    %301 = vmatmul.mubr.f32.gmra.mxu0 %v80
    %v302 = vpop.f32.mrf.mxu0
    %v303 = vadd.f32 0.0, %v302
    %v304 = vpop.f32.mrf.mxu0
    %305 = vmatprep.mubr.f32.mxu0 %v83
    %306 = vmatmul.mubr.f32.gmra.mxu0 %v82
    %v307 = vpop.f32.mrf.mxu0
    %v308 = vadd.f32 0.0, %v307
    %v309 = vpop.f32.mrf.mxu0
    %310 = vmatprep.mubr.f32.mxu0 %v85
    %311 = vmatmul.mubr.f32.gmra.mxu0 %v84
    %v312 = vpop.f32.mrf.mxu0
    %v313 = vadd.f32 0.0, %v312
    %v314 = vpop.f32.mrf.mxu0
    %315 = vmatprep.mubr.f32.mxu0 %v87
    %316 = vmatmul.mubr.f32.gmra.mxu0 %v86
    %v317 = vpop.f32.mrf.mxu0
    %v318 = vadd.f32 0.0, %v317
    %v319 = vpop.f32.mrf.mxu0
    %320 = vmatprep.mubr.f32.mxu0 %v89
    %321 = vmatmul.mubr.f32.gmra.mxu0 %v88
    %v322 = vpop.f32.mrf.mxu0
    %v323 = vadd.f32 0.0, %v322
    %v324 = vpop.f32.mrf.mxu0
    %325 = vmatprep.mubr.f32.mxu0 %v91
    %326 = vmatmul.mubr.f32.gmra.mxu0 %v90
    %v327 = vpop.f32.mrf.mxu0
    %v328 = vadd.f32 0.0, %v327
    %v329 = vpop.f32.mrf.mxu0
    %330 = vmatprep.mubr.f32.mxu0 %v93
    %331 = vmatmul.mubr.f32.gmra.mxu0 %v92
    %v332 = vpop.f32.mrf.mxu0
    %v333 = vadd.f32 0.0, %v332
    %v334 = vpop.f32.mrf.mxu0
    %335 = vmatprep.mubr.f32.mxu0 %v95
    %336 = vmatmul.mubr.f32.gmra.mxu0 %v94
    %v337 = vpop.f32.mrf.mxu0
    %v338 = vadd.f32 0.0, %v337
    %v339 = vpop.f32.mrf.mxu0
    %340 = vmatprep.mubr.f32.mxu0 %v97
    %341 = vmatmul.mubr.f32.gmra.mxu0 %v96
    %v342 = vpop.f32.mrf.mxu0
    %v343 = vadd.f32 0.0, %v342
    %v344 = vpop.f32.mrf.mxu0
    %345 = vmatprep.mubr.f32.mxu0 %v99
    %346 = vmatmul.mubr.f32.gmra.mxu0 %v98
    %v347 = vpop.f32.mrf.mxu0
    %v348 = vadd.f32 0.0, %v347
    %v349 = vpop.f32.mrf.mxu0
    %350 = vmatprep.mubr.f32.mxu0 %v101
    %351 = vmatmul.mubr.f32.gmra.mxu0 %v100
    %v352 = vpop.f32.mrf.mxu0
    %v353 = vadd.f32 0.0, %v352
    %v354 = vpop.f32.mrf.mxu0
    %355 = vmatprep.mubr.f32.mxu0 %v103
    %356 = vmatmul.mubr.f32.gmra.mxu0 %v102
    %v357 = vpop.f32.mrf.mxu0
    %v358 = vadd.f32 0.0, %v357
    %v359 = vpop.f32.mrf.mxu0
    %360 = vdwg.mxu0
    %361 = vmatprep.subr.mxu0 0.0
    %362 = vmatpush1.msra.mxu0 %v278
    %363 = vmatprep.subr.mxu0 0.0
    %364 = vmatpush1.msra.mxu0 %v273
    %365 = vmatprep.subr.mxu0 0.0
    %366 = vmatpush1.msra.mxu0 %v268
    %367 = vmatprep.subr.mxu0 0.0
    %368 = vmatpush1.msra.mxu0 %v263
    %369 = vmatprep.subr.mxu0 0.0
    %370 = vmatpush1.msra.mxu0 %v258
    %371 = vmatprep.subr.mxu0 0.0
    %372 = vmatpush1.msra.mxu0 %v253
    %373 = vmatprep.subr.mxu0 0.0
    %374 = vmatpush1.msra.mxu0 %v248
    %375 = vmatprep.subr.mxu0 0.0
    %376 = vmatpush1.msra.mxu0 %v243
    %377 = vmatprep.subr.mxu0 0.0
    %378 = vmatpush1.msra.mxu0 %v238
    %379 = vmatprep.subr.mxu0 0.0
    %380 = vmatpush1.msra.mxu0 %v233
    %381 = vmatprep.subr.mxu0 0.0
    %382 = vmatpush1.msra.mxu0 %v228
    %383 = vmatprep.subr.mxu0 0.0
    %384 = vmatpush1.msra.mxu0 %v223
    %385 = vmatprep.subr.mxu0 0.0
    %386 = vmatpush1.msra.mxu0 %v218
    %387 = vmatprep.subr.mxu0 0.0
    %388 = vmatpush1.msra.mxu0 %v213
    %389 = vmatprep.subr.mxu0 0.0
    %390 = vmatpush1.msra.mxu0 %v208
    %391 = vmatprep.subr.mxu0 0.0
    %392 = vmatpush1.msra.mxu0 %v203
    %393 = vmatprep.subr.mxu0 0.0
    %394 = vmatpush2.msra.mxu0 %v358
    %395 = vmatprep.subr.mxu0 0.0
    %396 = vmatpush2.msra.mxu0 %v353
    %397 = vmatprep.subr.mxu0 0.0
    %398 = vmatpush2.msra.mxu0 %v348
    %399 = vmatprep.subr.mxu0 0.0
    %400 = vmatpush2.msra.mxu0 %v343
    %401 = vmatprep.subr.mxu0 0.0
    %402 = vmatpush2.msra.mxu0 %v338
    %403 = vmatprep.subr.mxu0 0.0
    %404 = vmatpush2.msra.mxu0 %v333
    %405 = vmatprep.subr.mxu0 0.0
    %406 = vmatpush2.msra.mxu0 %v328
    %407 = vmatprep.subr.mxu0 0.0
    %408 = vmatpush2.msra.mxu0 %v323
    %409 = vmatprep.subr.mxu0 0.0
    %410 = vmatpush2.msra.mxu0 %v318
    %411 = vmatprep.subr.mxu0 0.0
    %412 = vmatpush2.msra.mxu0 %v313
    %413 = vmatprep.subr.mxu0 0.0
    %414 = vmatpush2.msra.mxu0 %v308
    %415 = vmatprep.subr.mxu0 0.0
    %416 = vmatpush2.msra.mxu0 %v303
    %417 = vmatprep.subr.mxu0 0.0
    %418 = vmatpush2.msra.mxu0 %v298
    %419 = vmatprep.subr.mxu0 0.0
    %420 = vmatpush2.msra.mxu0 %v293
    %421 = vmatprep.subr.mxu0 0.0
    %422 = vmatpush2.msra.mxu0 %v288
    %423 = vmatprep.subr.mxu0 0.0
    %424 = vmatpush2.msra.mxu0 %v283
    %425 = vmatprep.mubr.f32.mxu0 %v41
    %426 = vmatmul.mubr.f32.gmra.mxu0 %v40
    %v427 = vpop.f32.mrf.mxu0
    %v428 = vadd.f32 0.0, %v427
    %v429 = vpop.f32.mrf.mxu0
    %430 = vmatprep.mubr.f32.mxu0 %v43
    %431 = vmatmul.mubr.f32.gmra.mxu0 %v42
    %v432 = vpop.f32.mrf.mxu0
    %v433 = vadd.f32 0.0, %v432
    %v434 = vpop.f32.mrf.mxu0
    %435 = vmatprep.mubr.f32.mxu0 %v45
    %436 = vmatmul.mubr.f32.gmra.mxu0 %v44
    %v437 = vpop.f32.mrf.mxu0
    %v438 = vadd.f32 0.0, %v437
    %v439 = vpop.f32.mrf.mxu0
    %440 = vmatprep.mubr.f32.mxu0 %v47
    %441 = vmatmul.mubr.f32.gmra.mxu0 %v46
    %v442 = vpop.f32.mrf.mxu0
    %v443 = vadd.f32 0.0, %v442
    %v444 = vpop.f32.mrf.mxu0
    %445 = vmatprep.mubr.f32.mxu0 %v49
    %446 = vmatmul.mubr.f32.gmra.mxu0 %v48
    %v447 = vpop.f32.mrf.mxu0
    %v448 = vadd.f32 0.0, %v447
    %v449 = vpop.f32.mrf.mxu0
    %450 = vmatprep.mubr.f32.mxu0 %v51
    %451 = vmatmul.mubr.f32.gmra.mxu0 %v50
    %v452 = vpop.f32.mrf.mxu0
    %v453 = vadd.f32 0.0, %v452
    %v454 = vpop.f32.mrf.mxu0
    %455 = vmatprep.mubr.f32.mxu0 %v53
    %456 = vmatmul.mubr.f32.gmra.mxu0 %v52
    %v457 = vpop.f32.mrf.mxu0
    %v458 = vadd.f32 0.0, %v457
    %v459 = vpop.f32.mrf.mxu0
    %460 = vmatprep.mubr.f32.mxu0 %v55
    %461 = vmatmul.mubr.f32.gmra.mxu0 %v54
    %v462 = vpop.f32.mrf.mxu0
    %v463 = vadd.f32 0.0, %v462
    %v464 = vpop.f32.mrf.mxu0
    %465 = vmatprep.mubr.f32.mxu0 %v57
    %466 = vmatmul.mubr.f32.gmra.mxu0 %v56
    %v467 = vpop.f32.mrf.mxu0
    %v468 = vadd.f32 0.0, %v467
    %v469 = vpop.f32.mrf.mxu0
    %470 = vmatprep.mubr.f32.mxu0 %v59
    %471 = vmatmul.mubr.f32.gmra.mxu0 %v58
    %v472 = vpop.f32.mrf.mxu0
    %v473 = vadd.f32 0.0, %v472
    %v474 = vpop.f32.mrf.mxu0
    %475 = vmatprep.mubr.f32.mxu0 %v61
    %476 = vmatmul.mubr.f32.gmra.mxu0 %v60
    %v477 = vpop.f32.mrf.mxu0
    %v478 = vadd.f32 0.0, %v477
    %v479 = vpop.f32.mrf.mxu0
    %480 = vmatprep.mubr.f32.mxu0 %v63
    %481 = vmatmul.mubr.f32.gmra.mxu0 %v62
    %v482 = vpop.f32.mrf.mxu0
    %v483 = vadd.f32 0.0, %v482
    %v484 = vpop.f32.mrf.mxu0
    %485 = vmatprep.mubr.f32.mxu0 %v65
    %486 = vmatmul.mubr.f32.gmra.mxu0 %v64
    %v487 = vpop.f32.mrf.mxu0
    %v488 = vadd.f32 0.0, %v487
    %v489 = vpop.f32.mrf.mxu0
    %490 = vmatprep.mubr.f32.mxu0 %v67
    %491 = vmatmul.mubr.f32.gmra.mxu0 %v66
    %v492 = vpop.f32.mrf.mxu0
    %v493 = vadd.f32 0.0, %v492
    %v494 = vpop.f32.mrf.mxu0
    %495 = vmatprep.mubr.f32.mxu0 %v69
    %496 = vmatmul.mubr.f32.gmra.mxu0 %v68
    %v497 = vpop.f32.mrf.mxu0
    %v498 = vadd.f32 0.0, %v497
    %v499 = vpop.f32.mrf.mxu0
    %500 = vmatprep.mubr.f32.mxu0 %v71
    %501 = vmatmul.mubr.f32.gmra.mxu0 %v70
    %v502 = vpop.f32.mrf.mxu0
    %v503 = vadd.f32 0.0, %v502
    %v504 = vpop.f32.mrf.mxu0
    %505 = vmatprep.mubr.f32.mxu0 %v73
    %506 = vmatmul.mubr.f32.gmra.mxu0 %v72
    %v507 = vpop.f32.mrf.mxu0
    %v508 = vadd.f32 0.0, %v507
    %v509 = vpop.f32.mrf.mxu0
    %510 = vmatprep.mubr.f32.mxu0 %v75
    %511 = vmatmul.mubr.f32.gmra.mxu0 %v74
    %v512 = vpop.f32.mrf.mxu0
    %v513 = vadd.f32 0.0, %v512
    %v514 = vpop.f32.mrf.mxu0
    %515 = vmatprep.mubr.f32.mxu0 %v77
    %516 = vmatmul.mubr.f32.gmra.mxu0 %v76
    %v517 = vpop.f32.mrf.mxu0
    %v518 = vadd.f32 0.0, %v517
    %v519 = vpop.f32.mrf.mxu0
    %520 = vmatprep.mubr.f32.mxu0 %v79
    %521 = vmatmul.mubr.f32.gmra.mxu0 %v78
    %v522 = vpop.f32.mrf.mxu0
    %v523 = vadd.f32 0.0, %v522
    %v524 = vpop.f32.mrf.mxu0
    %525 = vmatprep.mubr.f32.mxu0 %v81
    %526 = vmatmul.mubr.f32.gmra.mxu0 %v80
    %v527 = vpop.f32.mrf.mxu0
    %v528 = vadd.f32 0.0, %v527
    %v529 = vpop.f32.mrf.mxu0
    %530 = vmatprep.mubr.f32.mxu0 %v83
    %531 = vmatmul.mubr.f32.gmra.mxu0 %v82
    %v532 = vpop.f32.mrf.mxu0
    %v533 = vadd.f32 0.0, %v532
    %v534 = vpop.f32.mrf.mxu0
    %535 = vmatprep.mubr.f32.mxu0 %v85
    %536 = vmatmul.mubr.f32.gmra.mxu0 %v84
    %v537 = vpop.f32.mrf.mxu0
    %v538 = vadd.f32 0.0, %v537
    %v539 = vpop.f32.mrf.mxu0
    %540 = vmatprep.mubr.f32.mxu0 %v87
    %541 = vmatmul.mubr.f32.gmra.mxu0 %v86
    %v542 = vpop.f32.mrf.mxu0
    %v543 = vadd.f32 0.0, %v542
    %v544 = vpop.f32.mrf.mxu0
    %545 = vmatprep.mubr.f32.mxu0 %v89
    %546 = vmatmul.mubr.f32.gmra.mxu0 %v88
    %v547 = vpop.f32.mrf.mxu0
    %v548 = vadd.f32 0.0, %v547
    %v549 = vpop.f32.mrf.mxu0
    %550 = vmatprep.mubr.f32.mxu0 %v91
    %551 = vmatmul.mubr.f32.gmra.mxu0 %v90
    %v552 = vpop.f32.mrf.mxu0
    %v553 = vadd.f32 0.0, %v552
    %v554 = vpop.f32.mrf.mxu0
    %555 = vmatprep.mubr.f32.mxu0 %v93
    %556 = vmatmul.mubr.f32.gmra.mxu0 %v92
    %v557 = vpop.f32.mrf.mxu0
    %v558 = vadd.f32 0.0, %v557
    %v559 = vpop.f32.mrf.mxu0
    %560 = vmatprep.mubr.f32.mxu0 %v95
    %561 = vmatmul.mubr.f32.gmra.mxu0 %v94
    %v562 = vpop.f32.mrf.mxu0
    %v563 = vadd.f32 0.0, %v562
    %v564 = vpop.f32.mrf.mxu0
    %565 = vmatprep.mubr.f32.mxu0 %v97
    %566 = vmatmul.mubr.f32.gmra.mxu0 %v96
    %v567 = vpop.f32.mrf.mxu0
    %v568 = vadd.f32 0.0, %v567
    %v569 = vpop.f32.mrf.mxu0
    %570 = vmatprep.mubr.f32.mxu0 %v99
    %571 = vmatmul.mubr.f32.gmra.mxu0 %v98
    %v572 = vpop.f32.mrf.mxu0
    %v573 = vadd.f32 0.0, %v572
    %v574 = vpop.f32.mrf.mxu0
    %575 = vmatprep.mubr.f32.mxu0 %v101
    %576 = vmatmul.mubr.f32.gmra.mxu0 %v100
    %v577 = vpop.f32.mrf.mxu0
    %v578 = vadd.f32 0.0, %v577
    %v579 = vpop.f32.mrf.mxu0
    %580 = vmatprep.mubr.f32.mxu0 %v103
    %581 = vmatmul.mubr.f32.gmra.mxu0 %v102
    %v582 = vpop.f32.mrf.mxu0
    %v583 = vadd.f32 0.0, %v582
    %v584 = vpop.f32.mrf.mxu0
    %585 = vdwg.mxu0
    %v586 = vmul.f32 %v428, %v428
    %v587 = vmul.f32 %v433, %v433
    %v588 = vmul.f32 %v438, %v438
    %v589 = vmul.f32 %v443, %v443
    %v590 = vmul.f32 %v448, %v448
    %v591 = vmul.f32 %v453, %v453
    %v592 = vmul.f32 %v458, %v458
    %v593 = vmul.f32 %v463, %v463
    %v594 = vmul.f32 %v468, %v468
    %v595 = vmul.f32 %v473, %v473
    %v596 = vmul.f32 %v478, %v478
    %v597 = vmul.f32 %v483, %v483
    %v598 = vmul.f32 %v488, %v488
    %v599 = vmul.f32 %v493, %v493
    %v600 = vmul.f32 %v498, %v498
    %v601 = vmul.f32 %v503, %v503
    %v602 = vmul.f32 %v508, %v508
    %v603 = vmul.f32 %v513, %v513
    %v604 = vmul.f32 %v518, %v518
    %v605 = vmul.f32 %v523, %v523
    %v606 = vmul.f32 %v528, %v528
    %v607 = vmul.f32 %v533, %v533
    %v608 = vmul.f32 %v538, %v538
    %v609 = vmul.f32 %v543, %v543
    %v610 = vmul.f32 %v548, %v548
    %v611 = vmul.f32 %v553, %v553
    %v612 = vmul.f32 %v558, %v558
    %v613 = vmul.f32 %v563, %v563
    %v614 = vmul.f32 %v568, %v568
    %v615 = vmul.f32 %v573, %v573
    %v616 = vmul.f32 %v578, %v578
    %v617 = vmul.f32 %v583, %v583
    %618 = vadd.xlane.f32.xlu0 %v586
    %v619 = vpop.xlane.xlu0 %618
    %620 = vadd.xlane.f32.xlu0 %v587
    %v621 = vpop.xlane.xlu0 %620
    %622 = vadd.xlane.f32.xlu0 %v588
    %v623 = vpop.xlane.xlu0 %622
    %624 = vadd.xlane.f32.xlu0 %v589
    %v625 = vpop.xlane.xlu0 %624
    %626 = vadd.xlane.f32.xlu0 %v590
    %v627 = vpop.xlane.xlu0 %626
    %628 = vadd.xlane.f32.xlu0 %v591
    %v629 = vpop.xlane.xlu0 %628
    %630 = vadd.xlane.f32.xlu0 %v592
    %v631 = vpop.xlane.xlu0 %630
    %632 = vadd.xlane.f32.xlu0 %v593
    %v633 = vpop.xlane.xlu0 %632
    %634 = vadd.xlane.f32.xlu0 %v594
    %v635 = vpop.xlane.xlu0 %634
    %636 = vadd.xlane.f32.xlu0 %v595
    %v637 = vpop.xlane.xlu0 %636
    %638 = vadd.xlane.f32.xlu0 %v596
    %v639 = vpop.xlane.xlu0 %638
    %640 = vadd.xlane.f32.xlu0 %v597
    %v641 = vpop.xlane.xlu0 %640
    %642 = vadd.xlane.f32.xlu0 %v598
    %v643 = vpop.xlane.xlu0 %642
    %644 = vadd.xlane.f32.xlu0 %v599
    %v645 = vpop.xlane.xlu0 %644
    %646 = vadd.xlane.f32.xlu0 %v600
    %v647 = vpop.xlane.xlu0 %646
    %648 = vadd.xlane.f32.xlu0 %v601
    %v649 = vpop.xlane.xlu0 %648
    %650 = vadd.xlane.f32.xlu0 %v602
    %v651 = vpop.xlane.xlu0 %650
    %652 = vadd.xlane.f32.xlu0 %v603
    %v653 = vpop.xlane.xlu0 %652
    %654 = vadd.xlane.f32.xlu0 %v604
    %v655 = vpop.xlane.xlu0 %654
    %656 = vadd.xlane.f32.xlu0 %v605
    %v657 = vpop.xlane.xlu0 %656
    %658 = vadd.xlane.f32.xlu0 %v606
    %v659 = vpop.xlane.xlu0 %658
    %660 = vadd.xlane.f32.xlu0 %v607
    %v661 = vpop.xlane.xlu0 %660
    %662 = vadd.xlane.f32.xlu0 %v608
    %v663 = vpop.xlane.xlu0 %662
    %664 = vadd.xlane.f32.xlu0 %v609
    %v665 = vpop.xlane.xlu0 %664
    %666 = vadd.xlane.f32.xlu0 %v610
    %v667 = vpop.xlane.xlu0 %666
    %668 = vadd.xlane.f32.xlu0 %v611
    %v669 = vpop.xlane.xlu0 %668
    %670 = vadd.xlane.f32.xlu0 %v612
    %v671 = vpop.xlane.xlu0 %670
    %672 = vadd.xlane.f32.xlu0 %v613
    %v673 = vpop.xlane.xlu0 %672
    %674 = vadd.xlane.f32.xlu0 %v614
    %v675 = vpop.xlane.xlu0 %674
    %676 = vadd.xlane.f32.xlu0 %v615
    %v677 = vpop.xlane.xlu0 %676
    %678 = vadd.xlane.f32.xlu0 %v616
    %v679 = vpop.xlane.xlu0 %678
    %680 = vadd.xlane.f32.xlu0 %v617
    %v681 = vpop.xlane.xlu0 %680
    %v682 = vmax.f32 %v619, 1e-24
    %v683 = vmax.f32 %v621, 1e-24
    %v684 = vmax.f32 %v623, 1e-24
    %v685 = vmax.f32 %v625, 1e-24
    %v686 = vmax.f32 %v627, 1e-24
    %v687 = vmax.f32 %v629, 1e-24
    %v688 = vmax.f32 %v631, 1e-24
    %v689 = vmax.f32 %v633, 1e-24
    %v690 = vmax.f32 %v635, 1e-24
    %v691 = vmax.f32 %v637, 1e-24
    %v692 = vmax.f32 %v639, 1e-24
    %v693 = vmax.f32 %v641, 1e-24
    %v694 = vmax.f32 %v643, 1e-24
    %v695 = vmax.f32 %v645, 1e-24
    %v696 = vmax.f32 %v647, 1e-24
    %v697 = vmax.f32 %v649, 1e-24
    %v698 = vmax.f32 %v651, 1e-24
    %v699 = vmax.f32 %v653, 1e-24
    %v700 = vmax.f32 %v655, 1e-24
    %v701 = vmax.f32 %v657, 1e-24
    %v702 = vmax.f32 %v659, 1e-24
    %v703 = vmax.f32 %v661, 1e-24
    %v704 = vmax.f32 %v663, 1e-24
    %v705 = vmax.f32 %v665, 1e-24
    %v706 = vmax.f32 %v667, 1e-24
    %v707 = vmax.f32 %v669, 1e-24
    %v708 = vmax.f32 %v671, 1e-24
    %v709 = vmax.f32 %v673, 1e-24
    %v710 = vmax.f32 %v675, 1e-24
    %v711 = vmax.f32 %v677, 1e-24
    %v712 = vmax.f32 %v679, 1e-24
    %v713 = vmax.f32 %v681, 1e-24
    %v714 = vrsqrt.pop %v682
    %v715 = vrsqrt.pop %v683
    %v716 = vrsqrt.pop %v684
    %v717 = vrsqrt.pop %v685
    %v718 = vrsqrt.pop %v686
    %v719 = vrsqrt.pop %v687
    %v720 = vrsqrt.pop %v688
    %v721 = vrsqrt.pop %v689
    %v722 = vrsqrt.pop %v690
    %v723 = vrsqrt.pop %v691
    %v724 = vrsqrt.pop %v692
    %v725 = vrsqrt.pop %v693
    %v726 = vrsqrt.pop %v694
    %v727 = vrsqrt.pop %v695
    %v728 = vrsqrt.pop %v696
    %v729 = vrsqrt.pop %v697
    %v730 = vrsqrt.pop %v698
    %v731 = vrsqrt.pop %v699
    %v732 = vrsqrt.pop %v700
    %v733 = vrsqrt.pop %v701
    %v734 = vrsqrt.pop %v702
    %v735 = vrsqrt.pop %v703
    %v736 = vrsqrt.pop %v704
    %v737 = vrsqrt.pop %v705
    %v738 = vrsqrt.pop %v706
    %v739 = vrsqrt.pop %v707
    %v740 = vrsqrt.pop %v708
    %v741 = vrsqrt.pop %v709
    %v742 = vrsqrt.pop %v710
    %v743 = vrsqrt.pop %v711
    %v744 = vrsqrt.pop %v712
    %v745 = vrsqrt.pop %v713
    %v746 = vmul.f32 %v428, %v714
    %v747 = vmul.f32 %v433, %v715
    %v748 = vmul.f32 %v438, %v716
    %v749 = vmul.f32 %v443, %v717
    %v750 = vmul.f32 %v448, %v718
    %v751 = vmul.f32 %v453, %v719
    %v752 = vmul.f32 %v458, %v720
    %v753 = vmul.f32 %v463, %v721
    %v754 = vmul.f32 %v468, %v722
    %v755 = vmul.f32 %v473, %v723
    %v756 = vmul.f32 %v478, %v724
    %v757 = vmul.f32 %v483, %v725
    %v758 = vmul.f32 %v488, %v726
    %v759 = vmul.f32 %v493, %v727
    %v760 = vmul.f32 %v498, %v728
    %v761 = vmul.f32 %v503, %v729
    %v762 = vmul.f32 %v508, %v730
    %v763 = vmul.f32 %v513, %v731
    %v764 = vmul.f32 %v518, %v732
    %v765 = vmul.f32 %v523, %v733
    %v766 = vmul.f32 %v528, %v734
    %v767 = vmul.f32 %v533, %v735
    %v768 = vmul.f32 %v538, %v736
    %v769 = vmul.f32 %v543, %v737
    %v770 = vmul.f32 %v548, %v738
    %v771 = vmul.f32 %v553, %v739
    %v772 = vmul.f32 %v558, %v740
    %v773 = vmul.f32 %v563, %v741
    %v774 = vmul.f32 %v568, %v742
    %v775 = vmul.f32 %v573, %v743
    %v776 = vmul.f32 %v578, %v744
    %v777 = vmul.f32 %v583, %v745
    %778 = vst [vmem:[#allocation7] sm:$0xff] %v746
    %779 = vst [vmem:[#allocation7 + $0x8] sm:$0xff] %v747
    %780 = vst [vmem:[#allocation7 + $0x10] sm:$0xff] %v748
    %781 = vst [vmem:[#allocation7 + $0x18] sm:$0xff] %v749
    %782 = vst [vmem:[#allocation7 + $0x20] sm:$0xff] %v750
    %783 = vst [vmem:[#allocation7 + $0x28] sm:$0xff] %v751
    %784 = vst [vmem:[#allocation7 + $0x30] sm:$0xff] %v752
    %785 = vst [vmem:[#allocation7 + $0x38] sm:$0xff] %v753
    %786 = vst [vmem:[#allocation7 + $0x40] sm:$0xff] %v754
    %787 = vst [vmem:[#allocation7 + $0x48] sm:$0xff] %v755
    %788 = vst [vmem:[#allocation7 + $0x50] sm:$0xff] %v756
    %789 = vst [vmem:[#allocation7 + $0x58] sm:$0xff] %v757
    %790 = vst [vmem:[#allocation7 + $0x60] sm:$0xff] %v758
    %791 = vst [vmem:[#allocation7 + $0x68] sm:$0xff] %v759
    %792 = vst [vmem:[#allocation7 + $0x70] sm:$0xff] %v760
    %793 = vst [vmem:[#allocation7 + $0x78] sm:$0xff] %v761
    %794 = vst [vmem:[#allocation7 + $0x80] sm:$0xff] %v762
    %795 = vst [vmem:[#allocation7 + $0x88] sm:$0xff] %v763
    %796 = vst [vmem:[#allocation7 + $0x90] sm:$0xff] %v764
    %797 = vst [vmem:[#allocation7 + $0x98] sm:$0xff] %v765
    %798 = vst [vmem:[#allocation7 + $0xa0] sm:$0xff] %v766
    %799 = vst [vmem:[#allocation7 + $0xa8] sm:$0xff] %v767
    %800 = vst [vmem:[#allocation7 + $0xb0] sm:$0xff] %v768
    %801 = vst [vmem:[#allocation7 + $0xb8] sm:$0xff] %v769
    %802 = vst [vmem:[#allocation7 + $0xc0] sm:$0xff] %v770
    %803 = vst [vmem:[#allocation7 + $0xc8] sm:$0xff] %v771
    %804 = vst [vmem:[#allocation7 + $0xd0] sm:$0xff] %v772
    %805 = vst [vmem:[#allocation7 + $0xd8] sm:$0xff] %v773
    %806 = vst [vmem:[#allocation7 + $0xe0] sm:$0xff] %v774
    %807 = vst [vmem:[#allocation7 + $0xe8] sm:$0xff] %v775
    %808 = vst [vmem:[#allocation7 + $0xf0] sm:$0xff] %v776
    %809 = vst [vmem:[#allocation7 + $0xf8] sm:$0xff] %v777
    // Predicated region
    $region18: #{gcn_fused.1} parent=1 // pred_check
      _
    $region19: #{gcn_fused.1} parent=1 // pred_check_branch
      %811 = sbr.rel (0) target = $region21
    $region20: #{gcn_fused.1} parent=1 // pred_region
      %s813 = ssub.s32 4096, 4096
      %814 = vsyncadd [#allocation4], %s813
      %s815 = sshll.u32 [#allocation7], 4
      %s816 = int_to_ptr.vmem [resolvable:$true] %s815
      %821 = dma.vmem_to_hbm [thread:$0]  %s816, 4096, %s2, [#allocation4], 128, 128, 8
    $region21: #{gcn_fused.1} parent=1 // pred_fallthru
      _
    // Predicated region
    $region22: #{gcn_fused.1} parent=1 // pred_check
      _
    $region23: #{gcn_fused.1} parent=1 // pred_check_branch
      %823 = sbr.rel (0) target = $region25
    $region24: #{gcn_fused.1} parent=1 // pred_region
      %824 = dma.done [#allocation4], 4096
    $region25: #{gcn_fused.1} parent=1 // pred_fallthru
      _
    %825 = vsyncpa [#allocation3], 1
    %826 = vsyncpa [#allocation6], 1
    %827 = vsyncpa [#allocation4], 1

</llo_original>
